<compile_context>
chip_gen: v5e
topology: v5e:2x2
jax: 0.10.0
libtpu: 0.0.40
codegen_flags: <defaults>
</compile_context>

<pallas_src>
import jax
import jax.numpy as jnp
from jax import lax
from jax.experimental import pallas as pl
from jax.experimental.pallas import tpu as pltpu


def _cka_kernel(x_ref, y_ref, o_ref, gxx_ref, gyy_ref, gxy_ref):
    step = pl.program_id(0)

    @pl.when(step == 0)
    def _():
        gxx_ref[...] = jnp.zeros_like(gxx_ref)
        gyy_ref[...] = jnp.zeros_like(gyy_ref)
        gxy_ref[...] = jnp.zeros_like(gxy_ref)

    # (tn, D) tiles in their native dtype; MXU accumulates in f32.
    x = x_ref[...]
    y = y_ref[...]

    # Contract on axis 0 of both operands (== X^T @ X etc.) without
    # materializing an explicit transpose through the XLU.
    dn = (((0,), (0,)), ((), ()))
    gxx_ref[...] += lax.dot_general(x, x, dn, preferred_element_type=jnp.float32)
    gyy_ref[...] += lax.dot_general(y, y, dn, preferred_element_type=jnp.float32)
    gxy_ref[...] += lax.dot_general(x, y, dn, preferred_element_type=jnp.float32)

    @pl.when(step == pl.num_programs(0) - 1)
    def _():
        a = jnp.sum(gxx_ref[...] * gxx_ref[...])    # == ||X X^T||_F^2
        b = jnp.sum(gyy_ref[...] * gyy_ref[...])    # == ||Y Y^T||_F^2
        num = jnp.sum(gxy_ref[...] * gxy_ref[...])  # == sum((X^T Y)^2)
        o_ref[0, 0] = num / (jnp.sqrt(a) * jnp.sqrt(b))


def _round_up(v: int, m: int) -> int:
    return ((v + m - 1) // m) * m


def normalized_simple_cka(x: jax.Array, y: jax.Array, *, tn: int = 256) -> jax.Array:
    """Pallas implementation of NormalizedSimpleCKA.forward for (N, D) inputs."""
    assert x.shape == y.shape, "feature shape should be equal if you use CKA"
    assert x.ndim == 2, "x, y should be (N, D) tensors"
    n, d = x.shape

    # Lane-pad D to a multiple of 128 with zero columns: zero columns add only
    # zero rows/cols to the Gram matrices, leaving every Frobenius sum exact.
    d_pad = _round_up(d, 128)

    # N (reduction) tile: large by default for MXU-K utilization / low per-step
    # overhead, shrunk (to a multiple of 8 sublanes) when N itself is small.
    tn_eff = _round_up(min(tn, _round_up(n, 8)), 8)
    n_pad = _round_up(n, tn_eff)  # zero rows contribute nothing to the Grams.

    if (n_pad, d_pad) != (n, d):
        x = jnp.pad(x, ((0, n_pad - n), (0, d_pad - d)))
        y = jnp.pad(y, ((0, n_pad - n), (0, d_pad - d)))

    itemsize = jnp.dtype(x.dtype).itemsize
    # 3 f32 (D,D) accumulators + 2 inputs * 2 pipeline buffers, plus headroom;
    # never drop below the default scoped limit, never ask beyond 128 MiB.
    vmem_bytes = 3 * d_pad * d_pad * 4 + 2 * 2 * tn_eff * d_pad * itemsize
    vmem_limit = min(max(int(vmem_bytes * 1.5) + (4 << 20), 32 << 20), 128 << 20)

    out = pl.pallas_call(
        _cka_kernel,
        out_shape=jax.ShapeDtypeStruct((1, 1), jnp.float32),
        grid_spec=pltpu.PrefetchScalarGridSpec(
            num_scalar_prefetch=0,
            grid=(n_pad // tn_eff,),
            in_specs=[
                pl.BlockSpec((tn_eff, d_pad), lambda i: (i, 0)),
                pl.BlockSpec((tn_eff, d_pad), lambda i: (i, 0)),
            ],
            out_specs=pl.BlockSpec(
                (1, 1), lambda i: (0, 0), memory_space=pltpu.MemorySpace.SMEM
            ),
            scratch_shapes=[
                pltpu.VMEM((d_pad, d_pad), jnp.float32),  # Gxx accumulator
                pltpu.VMEM((d_pad, d_pad), jnp.float32),  # Gyy accumulator
                pltpu.VMEM((d_pad, d_pad), jnp.float32),  # Gxy accumulator
            ],
        ),
        compiler_params=pltpu.CompilerParams(
            dimension_semantics=("arbitrary",),  # reduction over N tiles
            vmem_limit_bytes=vmem_limit,
        ),
    )(x, y)
    return out[0, 0]


def _reference(x, y):
    x = x.astype(jnp.float32)
    y = y.astype(jnp.float32)
    x_f = jnp.sqrt(jnp.sum((x @ x.T) ** 2))
    y_f = jnp.sqrt(jnp.sum((y @ y.T) ** 2))
    return jnp.sum((x.T @ y) ** 2) / (x_f * y_f)


if __name__ == "__main__":
    key = jax.random.PRNGKey(0)

    # Case 1: tiny (N, D) feature matrices (module's basic shape).
    k1, k2, k3, k4 = jax.random.split(key, 4)
    x1 = jax.random.normal(k1, (16, 32), dtype=jnp.float32)
    y1 = jax.random.normal(k2, (16, 32), dtype=jnp.float32)
    out1 = jax.block_until_ready(normalized_simple_cka(x1, y1))
    ref1 = _reference(x1, y1)
    assert jnp.allclose(out1, ref1, rtol=1e-5, atol=1e-5), (out1, ref1)

    # Case 2: exercises N/D padding and multi-step Gram accumulation.
    x2 = jax.random.normal(k3, (200, 96), dtype=jnp.float32)
    y2 = jax.random.normal(k4, (200, 96), dtype=jnp.float32)
    out2 = jax.block_until_ready(normalized_simple_cka(x2, y2, tn=64))
    ref2 = _reference(x2, y2)
    assert jnp.allclose(out2, ref2, rtol=1e-4, atol=1e-5), (out2, ref2)

    print("KERNEL_OK")
</pallas_src>

<mosaic_0001>
module attributes {stable_mosaic.version = 11 : i64} {
  func.func @_cka_kernel(%arg0: i32, %arg1: memref<16x128xf32, #tpu.memory_space<vmem>>, %arg2: memref<16x128xf32, #tpu.memory_space<vmem>>, %arg3: memref<1x1xf32, #tpu.memory_space<smem>>, %arg4: memref<128x128xf32, #tpu.memory_space<vmem>>, %arg5: memref<128x128xf32, #tpu.memory_space<vmem>>, %arg6: memref<128x128xf32, #tpu.memory_space<vmem>>) attributes {dimension_semantics = [#tpu.dimension_semantics<arbitrary>], iteration_bounds = array<i64: 1>, scalar_prefetch = 0 : i64, scratch_operands = 3 : i64, tpu.core_type = #tpu.core_type<tc>, window_params = [{transform_indices = @transform_0, window_bounds = array<i64: 16, 128>}, {transform_indices = @transform_1, window_bounds = array<i64: 16, 128>}, {transform_indices = @transform_2, window_bounds = array<i64: 1, 1>}]} {
    %c0_i32 = arith.constant 0 : i32
    %0 = arith.cmpi eq, %arg0, %c0_i32 : i32
    %1 = arith.extui %0 : i1 to i32
    %c0_i32_0 = arith.constant 0 : i32
    %2 = arith.cmpi ne, %1, %c0_i32_0 : i32
    scf.if %2 {
      %cst_20 = arith.constant 0.000000e+00 : f32
      %20 = vector.broadcast %cst_20 : f32 to vector<128x128xf32>
      %c0_21 = arith.constant 0 : index
      %c0_22 = arith.constant 0 : index
      %21 = vector.load %arg4[%c0_21, %c0_22] : memref<128x128xf32, #tpu.memory_space<vmem>>, vector<128x128xf32>
      tpu.vector_store %arg4[%c0_21, %c0_22], %20 {strides = array<i32>} : memref<128x128xf32, #tpu.memory_space<vmem>>, vector<128x128xf32>,
      %cst_23 = arith.constant 0.000000e+00 : f32
      %22 = vector.broadcast %cst_23 : f32 to vector<128x128xf32>
      %c0_24 = arith.constant 0 : index
      %c0_25 = arith.constant 0 : index
      %23 = vector.load %arg5[%c0_24, %c0_25] : memref<128x128xf32, #tpu.memory_space<vmem>>, vector<128x128xf32>
      tpu.vector_store %arg5[%c0_24, %c0_25], %22 {strides = array<i32>} : memref<128x128xf32, #tpu.memory_space<vmem>>, vector<128x128xf32>,
      %cst_26 = arith.constant 0.000000e+00 : f32
      %24 = vector.broadcast %cst_26 : f32 to vector<128x128xf32>
      %c0_27 = arith.constant 0 : index
      %c0_28 = arith.constant 0 : index
      %25 = vector.load %arg6[%c0_27, %c0_28] : memref<128x128xf32, #tpu.memory_space<vmem>>, vector<128x128xf32>
      tpu.vector_store %arg6[%c0_27, %c0_28], %24 {strides = array<i32>} : memref<128x128xf32, #tpu.memory_space<vmem>>, vector<128x128xf32>,
    } else {
    }
    %c0 = arith.constant 0 : index
    %c0_1 = arith.constant 0 : index
    %3 = vector.load %arg1[%c0, %c0_1] : memref<16x128xf32, #tpu.memory_space<vmem>>, vector<16x128xf32>
    %c0_2 = arith.constant 0 : index
    %c0_3 = arith.constant 0 : index
    %4 = vector.load %arg2[%c0_2, %c0_3] : memref<16x128xf32, #tpu.memory_space<vmem>>, vector<16x128xf32>
    %c0_4 = arith.constant 0 : index
    %c0_5 = arith.constant 0 : index
    %5 = vector.load %arg4[%c0_4, %c0_5] : memref<128x128xf32, #tpu.memory_space<vmem>>, vector<128x128xf32>
    %cst = arith.constant dense<0.000000e+00> : vector<128x128xf32>
    %6 = tpu.matmul %3, %3, %cst {dimension_numbers = #tpu.dot_dimension_numbers<[0], [0], [1], [1], [0, 1, 1, 1], [], []>} : vector<16x128xf32>, vector<16x128xf32>, vector<128x128xf32> -> vector<128x128xf32>
    %7 = arith.addf %5, %6 : vector<128x128xf32>
    %c0_6 = arith.constant 0 : index
    %c0_7 = arith.constant 0 : index
    %8 = vector.load %arg4[%c0_6, %c0_7] : memref<128x128xf32, #tpu.memory_space<vmem>>, vector<128x128xf32>
    tpu.vector_store %arg4[%c0_6, %c0_7], %7 {strides = array<i32>} : memref<128x128xf32, #tpu.memory_space<vmem>>, vector<128x128xf32>,
    %c0_8 = arith.constant 0 : index
    %c0_9 = arith.constant 0 : index
    %9 = vector.load %arg5[%c0_8, %c0_9] : memref<128x128xf32, #tpu.memory_space<vmem>>, vector<128x128xf32>
    %cst_10 = arith.constant dense<0.000000e+00> : vector<128x128xf32>
    %10 = tpu.matmul %4, %4, %cst_10 {dimension_numbers = #tpu.dot_dimension_numbers<[0], [0], [1], [1], [0, 1, 1, 1], [], []>} : vector<16x128xf32>, vector<16x128xf32>, vector<128x128xf32> -> vector<128x128xf32>
    %11 = arith.addf %9, %10 : vector<128x128xf32>
    %c0_11 = arith.constant 0 : index
    %c0_12 = arith.constant 0 : index
    %12 = vector.load %arg5[%c0_11, %c0_12] : memref<128x128xf32, #tpu.memory_space<vmem>>, vector<128x128xf32>
    tpu.vector_store %arg5[%c0_11, %c0_12], %11 {strides = array<i32>} : memref<128x128xf32, #tpu.memory_space<vmem>>, vector<128x128xf32>,
    %c0_13 = arith.constant 0 : index
    %c0_14 = arith.constant 0 : index
    %13 = vector.load %arg6[%c0_13, %c0_14] : memref<128x128xf32, #tpu.memory_space<vmem>>, vector<128x128xf32>
    %cst_15 = arith.constant dense<0.000000e+00> : vector<128x128xf32>
    %14 = tpu.matmul %3, %4, %cst_15 {dimension_numbers = #tpu.dot_dimension_numbers<[0], [0], [1], [1], [0, 1, 1, 1], [], []>} : vector<16x128xf32>, vector<16x128xf32>, vector<128x128xf32> -> vector<128x128xf32>
    %15 = arith.addf %13, %14 : vector<128x128xf32>
    %c0_16 = arith.constant 0 : index
    %c0_17 = arith.constant 0 : index
    %16 = vector.load %arg6[%c0_16, %c0_17] : memref<128x128xf32, #tpu.memory_space<vmem>>, vector<128x128xf32>
    tpu.vector_store %arg6[%c0_16, %c0_17], %15 {strides = array<i32>} : memref<128x128xf32, #tpu.memory_space<vmem>>, vector<128x128xf32>,
    %c0_i32_18 = arith.constant 0 : i32
    %17 = arith.cmpi eq, %arg0, %c0_i32_18 : i32
    %18 = arith.extui %17 : i1 to i32
    %c0_i32_19 = arith.constant 0 : i32
    %19 = arith.cmpi ne, %18, %c0_i32_19 : i32
    scf.if %19 {
      %c0_20 = arith.constant 0 : index
      %c0_21 = arith.constant 0 : index
      %20 = vector.load %arg4[%c0_20, %c0_21] : memref<128x128xf32, #tpu.memory_space<vmem>>, vector<128x128xf32>
      %c0_22 = arith.constant 0 : index
      %c0_23 = arith.constant 0 : index
      %21 = vector.load %arg4[%c0_22, %c0_23] : memref<128x128xf32, #tpu.memory_space<vmem>>, vector<128x128xf32>
      %22 = arith.mulf %20, %21 : vector<128x128xf32>
      %23 = vector.shape_cast %22 : vector<128x128xf32> to vector<1x128x128xf32>
      %cst_24 = arith.constant dense<0.000000e+00> : vector<1xf32>
      %24 = vector.multi_reduction <add>, %23, %cst_24 [1, 2] : vector<1x128x128xf32> to vector<1xf32>
      %25 = vector.shape_cast %24 : vector<1xf32> to vector<1x1x1xf32>
      %26 = vector.extract %25[0, 0, 0] : f32 from vector<1x1x1xf32>
      %c0_25 = arith.constant 0 : index
      %c0_26 = arith.constant 0 : index
      %27 = vector.load %arg5[%c0_25, %c0_26] : memref<128x128xf32, #tpu.memory_space<vmem>>, vector<128x128xf32>
      %c0_27 = arith.constant 0 : index
      %c0_28 = arith.constant 0 : index
      %28 = vector.load %arg5[%c0_27, %c0_28] : memref<128x128xf32, #tpu.memory_space<vmem>>, vector<128x128xf32>
      %29 = arith.mulf %27, %28 : vector<128x128xf32>
      %30 = vector.shape_cast %29 : vector<128x128xf32> to vector<1x128x128xf32>
      %cst_29 = arith.constant dense<0.000000e+00> : vector<1xf32>
      %31 = vector.multi_reduction <add>, %30, %cst_29 [1, 2] : vector<1x128x128xf32> to vector<1xf32>
      %32 = vector.shape_cast %31 : vector<1xf32> to vector<1x1x1xf32>
      %33 = vector.extract %32[0, 0, 0] : f32 from vector<1x1x1xf32>
      %c0_30 = arith.constant 0 : index
      %c0_31 = arith.constant 0 : index
      %34 = vector.load %arg6[%c0_30, %c0_31] : memref<128x128xf32, #tpu.memory_space<vmem>>, vector<128x128xf32>
      %c0_32 = arith.constant 0 : index
      %c0_33 = arith.constant 0 : index
      %35 = vector.load %arg6[%c0_32, %c0_33] : memref<128x128xf32, #tpu.memory_space<vmem>>, vector<128x128xf32>
      %36 = arith.mulf %34, %35 : vector<128x128xf32>
      %37 = vector.shape_cast %36 : vector<128x128xf32> to vector<1x128x128xf32>
      %cst_34 = arith.constant dense<0.000000e+00> : vector<1xf32>
      %38 = vector.multi_reduction <add>, %37, %cst_34 [1, 2] : vector<1x128x128xf32> to vector<1xf32>
      %39 = vector.shape_cast %38 : vector<1xf32> to vector<1x1x1xf32>
      %40 = vector.extract %39[0, 0, 0] : f32 from vector<1x1x1xf32>
      %41 = math.sqrt %26 : f32
      %42 = math.sqrt %33 : f32
      %43 = arith.mulf %41, %42 : f32
      %44 = arith.divf %40, %43 : f32
      %c0_35 = arith.constant 0 : index
      %c0_36 = arith.constant 0 : index
      %45 = memref.load %arg3[%c0_35, %c0_36] : memref<1x1xf32, #tpu.memory_space<smem>>
      memref.store %44, %arg3[%c0_35, %c0_36] : memref<1x1xf32, #tpu.memory_space<smem>>
    } else {
    }
    return
  }
  func.func @transform_0(%arg0: i32) -> (i32, i32) {
    %c0_i32 = arith.constant 0 : i32
    %c0_i32_0 = arith.constant 0 : i32
    return %arg0, %c0_i32 : i32, i32
  }
  func.func @transform_1(%arg0: i32) -> (i32, i32) {
    %c0_i32 = arith.constant 0 : i32
    %c0_i32_0 = arith.constant 0 : i32
    return %arg0, %c0_i32 : i32, i32
  }
  func.func @transform_2(%arg0: i32) -> (i32, i32) {
    %c0_i32 = arith.constant 0 : i32
    %c0_i32_0 = arith.constant 0 : i32
    %c0_i32_1 = arith.constant 0 : i32
    return %c0_i32, %c0_i32_0 : i32, i32
  }
}

</mosaic_0001>

<llo_original>
// kernel: tpu_custom_call.1
$region0: #{tpu_custom_call.1}
  #allocation0 [shape = 'u32[]', space=smem, size = 0x4, offset = 0x4, fixed_abs, tag = 'smem constant byte address 0x4 - core index']
  #allocation1 [shape = 'u32[72,128]{1,0:T(1,128)}', space=vmem, size = 0x9000, scoped, tag = 'internal scratch']
  #allocation2 [shape = 'f32[128,128]{1,0:T(8,128)}', space=vmem, size = 0x10000, scoped, tag = 'scratch operand']
  #allocation3 [shape = 'f32[128,128]{1,0:T(8,128)}', space=vmem, size = 0x10000, scoped, tag = 'scratch operand']
  #allocation4 [shape = 'f32[128,128]{1,0:T(8,128)}', space=vmem, size = 0x10000, scoped, tag = 'scratch operand']
  %s0 = inlined_call_operand.hbm [shape: f32[16,128], index: 0, kind: input, shape index: {}]
  %s1 = inlined_call_operand.hbm [shape: f32[16,128], index: 1, kind: input, shape index: {}]
  %s2 = inlined_call_operand.hbm [shape: f32[1,1], index: 2, kind: output, shape index: {}]
  %s3 = sld [smem:[#allocation0]]
  $region34: #{tpu_custom_call.1} parent=0
    _
  %s5 = ssub.s32 1, %s3
  %s6 = scalar_select 0, %s5, %s3
  $region1: #{tpu_custom_call.1} parent=0
    #allocation5 [shape = 'u8[8192]{0}', space=vmem, size = 0x2000, scoped, tag = 'input window, operand 0, single buffered']
    #allocation6 [shape = 's32[1]{0}', space=sflag, size = 0x4, scoped, tag = 'scoped memory for tpu_custom_call.1']
    #allocation7 [shape = 's32[1]{0}', space=sflag, size = 0x4, scoped, tag = 'scoped memory for tpu_custom_call.1']
    #allocation8 [shape = 'u8[8192]{0}', space=vmem, size = 0x2000, scoped, tag = 'input window, operand 1, single buffered']
    #allocation9 [shape = 's32[1]{0}', space=sflag, size = 0x4, scoped, tag = 'scoped memory for tpu_custom_call.1']
    #allocation10 [shape = 'u8[512]{0}', space=smem, size = 0x200, scoped, tag = 'output window, operand 0, single buffered']
    %7 = vsyncpa [#allocation6], 0
    %8 = vsyncpa [#allocation9], 0
    %9 = vsyncpa [#allocation7], 0
    // Predicated region
    $region2: #{tpu_custom_call.1} parent=1 // pred_check
      _
    $region3: #{tpu_custom_call.1} parent=1 // pred_check_branch
      %11 = sbr.rel (0) target = $region5
    $region4: #{tpu_custom_call.1} parent=1 // pred_region
      %13 = vsyncadd [#allocation6], 0
      %s14 = sshll.u32 %s0, 4
      %s15 = int_to_ptr.hbm [resolvable:$true] %s14
      %s16 = sshll.u32 [#allocation5], 4
      %s17 = int_to_ptr.vmem [resolvable:$true] %s16
      %22 = dma.hbm_to_vmem [thread:$0]  %s15, 256, %s17, [#allocation6], 128, 128, 8
    $region5: #{tpu_custom_call.1} parent=1 // pred_fallthru
      _
    // Predicated region
    $region6: #{tpu_custom_call.1} parent=1 // pred_check
      _
    $region7: #{tpu_custom_call.1} parent=1 // pred_check_branch
      %24 = sbr.rel (0) target = $region9
    $region8: #{tpu_custom_call.1} parent=1 // pred_region
      %26 = vsyncadd [#allocation9], 0
      %s27 = sshll.u32 %s1, 4
      %s28 = int_to_ptr.hbm [resolvable:$true] %s27
      %s29 = sshll.u32 [#allocation8], 4
      %s30 = int_to_ptr.vmem [resolvable:$true] %s29
      %35 = dma.hbm_to_vmem [thread:$0]  %s28, 256, %s30, [#allocation9], 128, 128, 8
    $region9: #{tpu_custom_call.1} parent=1 // pred_fallthru
      _
    // Predicated region
    $region10: #{tpu_custom_call.1} parent=1 // pred_check
      _
    $region11: #{tpu_custom_call.1} parent=1 // pred_check_branch
      %37 = sbr.rel (0) target = $region13
    $region12: #{tpu_custom_call.1} parent=1 // pred_region
      %39 = dma.done [#allocation6], 256
    $region13: #{tpu_custom_call.1} parent=1 // pred_fallthru
      _
    // Predicated region
    $region14: #{tpu_custom_call.1} parent=1 // pred_check
      _
    $region15: #{tpu_custom_call.1} parent=1 // pred_check_branch
      %41 = sbr.rel (0) target = $region17
    $region16: #{tpu_custom_call.1} parent=1 // pred_region
      %43 = dma.done [#allocation9], 256
    $region17: #{tpu_custom_call.1} parent=1 // pred_fallthru
      _
    %p44 = scmp.eq.s32.totalorder 0, 0
    // Predicated region
    $region18: #{tpu_custom_call.1} parent=1 // pred_check
      %p45 = pneg %p44
    $region19: #{tpu_custom_call.1} parent=1 // pred_check_branch
      %47 = sbr.rel (%p45) target = $region21
    $region20: #{tpu_custom_call.1} parent=1 // pred_region
      %48 = vst [vmem:[#allocation2] sm:$0xff] 0.0
      %49 = vst [vmem:[#allocation2 + $0x8] sm:$0xff] 0.0
      %50 = vst [vmem:[#allocation2 + $0x10] sm:$0xff] 0.0
      %51 = vst [vmem:[#allocation2 + $0x18] sm:$0xff] 0.0
      %52 = vst [vmem:[#allocation2 + $0x20] sm:$0xff] 0.0
      %53 = vst [vmem:[#allocation2 + $0x28] sm:$0xff] 0.0
      %54 = vst [vmem:[#allocation2 + $0x30] sm:$0xff] 0.0
      %55 = vst [vmem:[#allocation2 + $0x38] sm:$0xff] 0.0
      %56 = vst [vmem:[#allocation2 + $0x40] sm:$0xff] 0.0
      %57 = vst [vmem:[#allocation2 + $0x48] sm:$0xff] 0.0
      %58 = vst [vmem:[#allocation2 + $0x50] sm:$0xff] 0.0
      %59 = vst [vmem:[#allocation2 + $0x58] sm:$0xff] 0.0
      %60 = vst [vmem:[#allocation2 + $0x60] sm:$0xff] 0.0
      %61 = vst [vmem:[#allocation2 + $0x68] sm:$0xff] 0.0
      %62 = vst [vmem:[#allocation2 + $0x70] sm:$0xff] 0.0
      %63 = vst [vmem:[#allocation2 + $0x78] sm:$0xff] 0.0
      %64 = vst [vmem:[#allocation3] sm:$0xff] 0.0
      %65 = vst [vmem:[#allocation3 + $0x8] sm:$0xff] 0.0
      %66 = vst [vmem:[#allocation3 + $0x10] sm:$0xff] 0.0
      %67 = vst [vmem:[#allocation3 + $0x18] sm:$0xff] 0.0
      %68 = vst [vmem:[#allocation3 + $0x20] sm:$0xff] 0.0
      %69 = vst [vmem:[#allocation3 + $0x28] sm:$0xff] 0.0
      %70 = vst [vmem:[#allocation3 + $0x30] sm:$0xff] 0.0
      %71 = vst [vmem:[#allocation3 + $0x38] sm:$0xff] 0.0
      %72 = vst [vmem:[#allocation3 + $0x40] sm:$0xff] 0.0
      %73 = vst [vmem:[#allocation3 + $0x48] sm:$0xff] 0.0
      %74 = vst [vmem:[#allocation3 + $0x50] sm:$0xff] 0.0
      %75 = vst [vmem:[#allocation3 + $0x58] sm:$0xff] 0.0
      %76 = vst [vmem:[#allocation3 + $0x60] sm:$0xff] 0.0
      %77 = vst [vmem:[#allocation3 + $0x68] sm:$0xff] 0.0
      %78 = vst [vmem:[#allocation3 + $0x70] sm:$0xff] 0.0
      %79 = vst [vmem:[#allocation3 + $0x78] sm:$0xff] 0.0
      %80 = vst [vmem:[#allocation4] sm:$0xff] 0.0
      %81 = vst [vmem:[#allocation4 + $0x8] sm:$0xff] 0.0
      %82 = vst [vmem:[#allocation4 + $0x10] sm:$0xff] 0.0
      %83 = vst [vmem:[#allocation4 + $0x18] sm:$0xff] 0.0
      %84 = vst [vmem:[#allocation4 + $0x20] sm:$0xff] 0.0
      %85 = vst [vmem:[#allocation4 + $0x28] sm:$0xff] 0.0
      %86 = vst [vmem:[#allocation4 + $0x30] sm:$0xff] 0.0
      %87 = vst [vmem:[#allocation4 + $0x38] sm:$0xff] 0.0
      %88 = vst [vmem:[#allocation4 + $0x40] sm:$0xff] 0.0
      %89 = vst [vmem:[#allocation4 + $0x48] sm:$0xff] 0.0
      %90 = vst [vmem:[#allocation4 + $0x50] sm:$0xff] 0.0
      %91 = vst [vmem:[#allocation4 + $0x58] sm:$0xff] 0.0
      %92 = vst [vmem:[#allocation4 + $0x60] sm:$0xff] 0.0
      %93 = vst [vmem:[#allocation4 + $0x68] sm:$0xff] 0.0
      %94 = vst [vmem:[#allocation4 + $0x70] sm:$0xff] 0.0
      %95 = vst [vmem:[#allocation4 + $0x78] sm:$0xff] 0.0
    $region21: #{tpu_custom_call.1} parent=1 // pred_fallthru
      _
    %v96 = vld [vmem:[#allocation5] sm:$0xff]
    %v97 = vld [vmem:[#allocation5 + $0x8] sm:$0xff]
    %v98 = vld [vmem:[#allocation8] sm:$0xff]
    %v99 = vld [vmem:[#allocation8 + $0x8] sm:$0xff]
    %v100 = vld [vmem:[#allocation2] sm:$0xff]
    %v101 = vld [vmem:[#allocation2 + $0x8] sm:$0xff]
    %v102 = vld [vmem:[#allocation2 + $0x10] sm:$0xff]
    %v103 = vld [vmem:[#allocation2 + $0x18] sm:$0xff]
    %v104 = vld [vmem:[#allocation2 + $0x20] sm:$0xff]
    %v105 = vld [vmem:[#allocation2 + $0x28] sm:$0xff]
    %v106 = vld [vmem:[#allocation2 + $0x30] sm:$0xff]
    %v107 = vld [vmem:[#allocation2 + $0x38] sm:$0xff]
    %v108 = vld [vmem:[#allocation2 + $0x40] sm:$0xff]
    %v109 = vld [vmem:[#allocation2 + $0x48] sm:$0xff]
    %v110 = vld [vmem:[#allocation2 + $0x50] sm:$0xff]
    %v111 = vld [vmem:[#allocation2 + $0x58] sm:$0xff]
    %v112 = vld [vmem:[#allocation2 + $0x60] sm:$0xff]
    %v113 = vld [vmem:[#allocation2 + $0x68] sm:$0xff]
    %v114 = vld [vmem:[#allocation2 + $0x70] sm:$0xff]
    %v115 = vld [vmem:[#allocation2 + $0x78] sm:$0xff]
    %116 = vxpose.xlu0.b32.start [1/16] %v96, 128
    %117 = vxpose.xlu0.b32.cont [2/16] %v97, 128
    %118 = vxpose.xlu0.b32.cont [3/16] 0.0, 128
    %119 = vxpose.xlu0.b32.cont [4/16] 0.0, 128
    %120 = vxpose.xlu0.b32.cont [5/16] 0.0, 128
    %121 = vxpose.xlu0.b32.cont [6/16] 0.0, 128
    %122 = vxpose.xlu0.b32.cont [7/16] 0.0, 128
    %123 = vxpose.xlu0.b32.cont [8/16] 0.0, 128
    %124 = vxpose.xlu0.b32.cont [9/16] 0.0, 128
    %125 = vxpose.xlu0.b32.cont [10/16] 0.0, 128
    %126 = vxpose.xlu0.b32.cont [11/16] 0.0, 128
    %127 = vxpose.xlu0.b32.cont [12/16] 0.0, 128
    %128 = vxpose.xlu0.b32.cont [13/16] 0.0, 128
    %129 = vxpose.xlu0.b32.cont [14/16] 0.0, 128
    %130 = vxpose.xlu0.b32.cont [15/16] 0.0, 128
    %131 = vxpose.xlu0.b32.end [16/16] 0.0, 128
    %v132 = vpop.trf.xlu0
    %v133 = vpop.trf.xlu0
    %v134 = vpop.trf.xlu0
    %v135 = vpop.trf.xlu0
    %v136 = vpop.trf.xlu0
    %v137 = vpop.trf.xlu0
    %v138 = vpop.trf.xlu0
    %v139 = vpop.trf.xlu0
    %v140 = vpop.trf.xlu0
    %v141 = vpop.trf.xlu0
    %v142 = vpop.trf.xlu0
    %v143 = vpop.trf.xlu0
    %v144 = vpop.trf.xlu0
    %v145 = vpop.trf.xlu0
    %v146 = vpop.trf.xlu0
    %v147 = vpop.trf.xlu0
    %vm148 = vcmask 130048
    %v150 = vsel %vm148, %v132, 0
    %v153 = vsel %vm148, %v133, 0
    %v156 = vsel %vm148, %v134, 0
    %v159 = vsel %vm148, %v135, 0
    %v162 = vsel %vm148, %v136, 0
    %v165 = vsel %vm148, %v137, 0
    %v168 = vsel %vm148, %v138, 0
    %v171 = vsel %vm148, %v139, 0
    %v174 = vsel %vm148, %v140, 0
    %v177 = vsel %vm148, %v141, 0
    %v180 = vsel %vm148, %v142, 0
    %v183 = vsel %vm148, %v143, 0
    %v186 = vsel %vm148, %v144, 0
    %v189 = vsel %vm148, %v145, 0
    %v192 = vsel %vm148, %v146, 0
    %v195 = vsel %vm148, %v147, 0
    %197 = vmatpush.msra.mxu0 0.0
    %198 = vmatpush.msra.mxu0 0.0
    %199 = vmatpush.msra.mxu0 0.0
    %200 = vmatpush.msra.mxu0 0.0
    %201 = vmatpush.msra.mxu0 0.0
    %202 = vmatpush.msra.mxu0 0.0
    %203 = vmatpush.msra.mxu0 0.0
    %204 = vmatpush.msra.mxu0 0.0
    %205 = vmatpush.msra.mxu0 0.0
    %206 = vmatpush.msra.mxu0 0.0
    %207 = vmatpush.msra.mxu0 0.0
    %208 = vmatpush.msra.mxu0 0.0
    %209 = vmatpush.msra.mxu0 0.0
    %210 = vmatpush.msra.mxu0 0.0
    %211 = vmatpush.msra.mxu0 %v97
    %212 = vmatpush.msra.mxu0 %v96
    %213 = vmatmul.f32.gmra.mxu0 %v150
    %v214 = vpop.f32.mrf.mxu0
    %v215 = vadd.f32 0.0, %v214
    %216 = vmatmul.f32.gmra.mxu0 %v153
    %v217 = vpop.f32.mrf.mxu0
    %v218 = vadd.f32 0.0, %v217
    %219 = vmatmul.f32.gmra.mxu0 %v156
    %v220 = vpop.f32.mrf.mxu0
    %v221 = vadd.f32 0.0, %v220
    %222 = vmatmul.f32.gmra.mxu0 %v159
    %v223 = vpop.f32.mrf.mxu0
    %v224 = vadd.f32 0.0, %v223
    %225 = vmatmul.f32.gmra.mxu0 %v162
    %v226 = vpop.f32.mrf.mxu0
    %v227 = vadd.f32 0.0, %v226
    %228 = vmatmul.f32.gmra.mxu0 %v165
    %v229 = vpop.f32.mrf.mxu0
    %v230 = vadd.f32 0.0, %v229
    %231 = vmatmul.f32.gmra.mxu0 %v168
    %v232 = vpop.f32.mrf.mxu0
    %v233 = vadd.f32 0.0, %v232
    %234 = vmatmul.f32.gmra.mxu0 %v171
    %v235 = vpop.f32.mrf.mxu0
    %v236 = vadd.f32 0.0, %v235
    %237 = vmatmul.f32.gmra.mxu0 %v174
    %v238 = vpop.f32.mrf.mxu0
    %v239 = vadd.f32 0.0, %v238
    %240 = vmatmul.f32.gmra.mxu0 %v177
    %v241 = vpop.f32.mrf.mxu0
    %v242 = vadd.f32 0.0, %v241
    %243 = vmatmul.f32.gmra.mxu0 %v180
    %v244 = vpop.f32.mrf.mxu0
    %v245 = vadd.f32 0.0, %v244
    %246 = vmatmul.f32.gmra.mxu0 %v183
    %v247 = vpop.f32.mrf.mxu0
    %v248 = vadd.f32 0.0, %v247
    %249 = vmatmul.f32.gmra.mxu0 %v186
    %v250 = vpop.f32.mrf.mxu0
    %v251 = vadd.f32 0.0, %v250
    %252 = vmatmul.f32.gmra.mxu0 %v189
    %v253 = vpop.f32.mrf.mxu0
    %v254 = vadd.f32 0.0, %v253
    %255 = vmatmul.f32.gmra.mxu0 %v192
    %v256 = vpop.f32.mrf.mxu0
    %v257 = vadd.f32 0.0, %v256
    %258 = vmatmul.f32.gmra.mxu0 %v195
    %v259 = vpop.f32.mrf.mxu0
    %v260 = vadd.f32 0.0, %v259
    %261 = vdwg.mxu0
    %v262 = vadd.f32 %v100, %v215
    %v263 = vadd.f32 %v101, %v218
    %v264 = vadd.f32 %v102, %v221
    %v265 = vadd.f32 %v103, %v224
    %v266 = vadd.f32 %v104, %v227
    %v267 = vadd.f32 %v105, %v230
    %v268 = vadd.f32 %v106, %v233
    %v269 = vadd.f32 %v107, %v236
    %v270 = vadd.f32 %v108, %v239
    %v271 = vadd.f32 %v109, %v242
    %v272 = vadd.f32 %v110, %v245
    %v273 = vadd.f32 %v111, %v248
    %v274 = vadd.f32 %v112, %v251
    %v275 = vadd.f32 %v113, %v254
    %v276 = vadd.f32 %v114, %v257
    %v277 = vadd.f32 %v115, %v260
    %278 = vst [vmem:[#allocation2] sm:$0xff] %v262
    %279 = vst [vmem:[#allocation2 + $0x8] sm:$0xff] %v263
    %280 = vst [vmem:[#allocation2 + $0x10] sm:$0xff] %v264
    %281 = vst [vmem:[#allocation2 + $0x18] sm:$0xff] %v265
    %282 = vst [vmem:[#allocation2 + $0x20] sm:$0xff] %v266
    %283 = vst [vmem:[#allocation2 + $0x28] sm:$0xff] %v267
    %284 = vst [vmem:[#allocation2 + $0x30] sm:$0xff] %v268
    %285 = vst [vmem:[#allocation2 + $0x38] sm:$0xff] %v269
    %286 = vst [vmem:[#allocation2 + $0x40] sm:$0xff] %v270
    %287 = vst [vmem:[#allocation2 + $0x48] sm:$0xff] %v271
    %288 = vst [vmem:[#allocation2 + $0x50] sm:$0xff] %v272
    %289 = vst [vmem:[#allocation2 + $0x58] sm:$0xff] %v273
    %290 = vst [vmem:[#allocation2 + $0x60] sm:$0xff] %v274
    %291 = vst [vmem:[#allocation2 + $0x68] sm:$0xff] %v275
    %292 = vst [vmem:[#allocation2 + $0x70] sm:$0xff] %v276
    %293 = vst [vmem:[#allocation2 + $0x78] sm:$0xff] %v277
    %v294 = vld [vmem:[#allocation3] sm:$0xff]
    %v295 = vld [vmem:[#allocation3 + $0x8] sm:$0xff]
    %v296 = vld [vmem:[#allocation3 + $0x10] sm:$0xff]
    %v297 = vld [vmem:[#allocation3 + $0x18] sm:$0xff]
    %v298 = vld [vmem:[#allocation3 + $0x20] sm:$0xff]
    %v299 = vld [vmem:[#allocation3 + $0x28] sm:$0xff]
    %v300 = vld [vmem:[#allocation3 + $0x30] sm:$0xff]
    %v301 = vld [vmem:[#allocation3 + $0x38] sm:$0xff]
    %v302 = vld [vmem:[#allocation3 + $0x40] sm:$0xff]
    %v303 = vld [vmem:[#allocation3 + $0x48] sm:$0xff]
    %v304 = vld [vmem:[#allocation3 + $0x50] sm:$0xff]
    %v305 = vld [vmem:[#allocation3 + $0x58] sm:$0xff]
    %v306 = vld [vmem:[#allocation3 + $0x60] sm:$0xff]
    %v307 = vld [vmem:[#allocation3 + $0x68] sm:$0xff]
    %v308 = vld [vmem:[#allocation3 + $0x70] sm:$0xff]
    %v309 = vld [vmem:[#allocation3 + $0x78] sm:$0xff]
    %310 = vxpose.xlu0.b32.start [1/16] %v98, 128
    %311 = vxpose.xlu0.b32.cont [2/16] %v99, 128
    %312 = vxpose.xlu0.b32.cont [3/16] 0.0, 128
    %313 = vxpose.xlu0.b32.cont [4/16] 0.0, 128
    %314 = vxpose.xlu0.b32.cont [5/16] 0.0, 128
    %315 = vxpose.xlu0.b32.cont [6/16] 0.0, 128
    %316 = vxpose.xlu0.b32.cont [7/16] 0.0, 128
    %317 = vxpose.xlu0.b32.cont [8/16] 0.0, 128
    %318 = vxpose.xlu0.b32.cont [9/16] 0.0, 128
    %319 = vxpose.xlu0.b32.cont [10/16] 0.0, 128
    %320 = vxpose.xlu0.b32.cont [11/16] 0.0, 128
    %321 = vxpose.xlu0.b32.cont [12/16] 0.0, 128
    %322 = vxpose.xlu0.b32.cont [13/16] 0.0, 128
    %323 = vxpose.xlu0.b32.cont [14/16] 0.0, 128
    %324 = vxpose.xlu0.b32.cont [15/16] 0.0, 128
    %325 = vxpose.xlu0.b32.end [16/16] 0.0, 128
    %v326 = vpop.trf.xlu0
    %v327 = vpop.trf.xlu0
    %v328 = vpop.trf.xlu0
    %v329 = vpop.trf.xlu0
    %v330 = vpop.trf.xlu0
    %v331 = vpop.trf.xlu0
    %v332 = vpop.trf.xlu0
    %v333 = vpop.trf.xlu0
    %v334 = vpop.trf.xlu0
    %v335 = vpop.trf.xlu0
    %v336 = vpop.trf.xlu0
    %v337 = vpop.trf.xlu0
    %v338 = vpop.trf.xlu0
    %v339 = vpop.trf.xlu0
    %v340 = vpop.trf.xlu0
    %v341 = vpop.trf.xlu0
    %v343 = vsel %vm148, %v326, 0
    %v346 = vsel %vm148, %v327, 0
    %v349 = vsel %vm148, %v328, 0
    %v352 = vsel %vm148, %v329, 0
    %v355 = vsel %vm148, %v330, 0
    %v358 = vsel %vm148, %v331, 0
    %v361 = vsel %vm148, %v332, 0
    %v364 = vsel %vm148, %v333, 0
    %v367 = vsel %vm148, %v334, 0
    %v370 = vsel %vm148, %v335, 0
    %v373 = vsel %vm148, %v336, 0
    %v376 = vsel %vm148, %v337, 0
    %v379 = vsel %vm148, %v338, 0
    %v382 = vsel %vm148, %v339, 0
    %v385 = vsel %vm148, %v340, 0
    %v388 = vsel %vm148, %v341, 0
    %390 = vmatpush.msra.mxu0 0.0
    %391 = vmatpush.msra.mxu0 0.0
    %392 = vmatpush.msra.mxu0 0.0
    %393 = vmatpush.msra.mxu0 0.0
    %394 = vmatpush.msra.mxu0 0.0
    %395 = vmatpush.msra.mxu0 0.0
    %396 = vmatpush.msra.mxu0 0.0
    %397 = vmatpush.msra.mxu0 0.0
    %398 = vmatpush.msra.mxu0 0.0
    %399 = vmatpush.msra.mxu0 0.0
    %400 = vmatpush.msra.mxu0 0.0
    %401 = vmatpush.msra.mxu0 0.0
    %402 = vmatpush.msra.mxu0 0.0
    %403 = vmatpush.msra.mxu0 0.0
    %404 = vmatpush.msra.mxu0 %v99
    %405 = vmatpush.msra.mxu0 %v98
    %406 = vmatmul.f32.gmra.mxu0 %v343
    %v407 = vpop.f32.mrf.mxu0
    %v408 = vadd.f32 0.0, %v407
    %409 = vmatmul.f32.gmra.mxu0 %v346
    %v410 = vpop.f32.mrf.mxu0
    %v411 = vadd.f32 0.0, %v410
    %412 = vmatmul.f32.gmra.mxu0 %v349
    %v413 = vpop.f32.mrf.mxu0
    %v414 = vadd.f32 0.0, %v413
    %415 = vmatmul.f32.gmra.mxu0 %v352
    %v416 = vpop.f32.mrf.mxu0
    %v417 = vadd.f32 0.0, %v416
    %418 = vmatmul.f32.gmra.mxu0 %v355
    %v419 = vpop.f32.mrf.mxu0
    %v420 = vadd.f32 0.0, %v419
    %421 = vmatmul.f32.gmra.mxu0 %v358
    %v422 = vpop.f32.mrf.mxu0
    %v423 = vadd.f32 0.0, %v422
    %424 = vmatmul.f32.gmra.mxu0 %v361
    %v425 = vpop.f32.mrf.mxu0
    %v426 = vadd.f32 0.0, %v425
    %427 = vmatmul.f32.gmra.mxu0 %v364
    %v428 = vpop.f32.mrf.mxu0
    %v429 = vadd.f32 0.0, %v428
    %430 = vmatmul.f32.gmra.mxu0 %v367
    %v431 = vpop.f32.mrf.mxu0
    %v432 = vadd.f32 0.0, %v431
    %433 = vmatmul.f32.gmra.mxu0 %v370
    %v434 = vpop.f32.mrf.mxu0
    %v435 = vadd.f32 0.0, %v434
    %436 = vmatmul.f32.gmra.mxu0 %v373
    %v437 = vpop.f32.mrf.mxu0
    %v438 = vadd.f32 0.0, %v437
    %439 = vmatmul.f32.gmra.mxu0 %v376
    %v440 = vpop.f32.mrf.mxu0
    %v441 = vadd.f32 0.0, %v440
    %442 = vmatmul.f32.gmra.mxu0 %v379
    %v443 = vpop.f32.mrf.mxu0
    %v444 = vadd.f32 0.0, %v443
    %445 = vmatmul.f32.gmra.mxu0 %v382
    %v446 = vpop.f32.mrf.mxu0
    %v447 = vadd.f32 0.0, %v446
    %448 = vmatmul.f32.gmra.mxu0 %v385
    %v449 = vpop.f32.mrf.mxu0
    %v450 = vadd.f32 0.0, %v449
    %451 = vmatmul.f32.gmra.mxu0 %v388
    %v452 = vpop.f32.mrf.mxu0
    %v453 = vadd.f32 0.0, %v452
    %454 = vdwg.mxu0
    %v455 = vadd.f32 %v294, %v408
    %v456 = vadd.f32 %v295, %v411
    %v457 = vadd.f32 %v296, %v414
    %v458 = vadd.f32 %v297, %v417
    %v459 = vadd.f32 %v298, %v420
    %v460 = vadd.f32 %v299, %v423
    %v461 = vadd.f32 %v300, %v426
    %v462 = vadd.f32 %v301, %v429
    %v463 = vadd.f32 %v302, %v432
    %v464 = vadd.f32 %v303, %v435
    %v465 = vadd.f32 %v304, %v438
    %v466 = vadd.f32 %v305, %v441
    %v467 = vadd.f32 %v306, %v444
    %v468 = vadd.f32 %v307, %v447
    %v469 = vadd.f32 %v308, %v450
    %v470 = vadd.f32 %v309, %v453
    %471 = vst [vmem:[#allocation3] sm:$0xff] %v455
    %472 = vst [vmem:[#allocation3 + $0x8] sm:$0xff] %v456
    %473 = vst [vmem:[#allocation3 + $0x10] sm:$0xff] %v457
    %474 = vst [vmem:[#allocation3 + $0x18] sm:$0xff] %v458
    %475 = vst [vmem:[#allocation3 + $0x20] sm:$0xff] %v459
    %476 = vst [vmem:[#allocation3 + $0x28] sm:$0xff] %v460
    %477 = vst [vmem:[#allocation3 + $0x30] sm:$0xff] %v461
    %478 = vst [vmem:[#allocation3 + $0x38] sm:$0xff] %v462
    %479 = vst [vmem:[#allocation3 + $0x40] sm:$0xff] %v463
    %480 = vst [vmem:[#allocation3 + $0x48] sm:$0xff] %v464
    %481 = vst [vmem:[#allocation3 + $0x50] sm:$0xff] %v465
    %482 = vst [vmem:[#allocation3 + $0x58] sm:$0xff] %v466
    %483 = vst [vmem:[#allocation3 + $0x60] sm:$0xff] %v467
    %484 = vst [vmem:[#allocation3 + $0x68] sm:$0xff] %v468
    %485 = vst [vmem:[#allocation3 + $0x70] sm:$0xff] %v469
    %486 = vst [vmem:[#allocation3 + $0x78] sm:$0xff] %v470
    %v487 = vld [vmem:[#allocation4] sm:$0xff]
    %v488 = vld [vmem:[#allocation4 + $0x8] sm:$0xff]
    %v489 = vld [vmem:[#allocation4 + $0x10] sm:$0xff]
    %v490 = vld [vmem:[#allocation4 + $0x18] sm:$0xff]
    %v491 = vld [vmem:[#allocation4 + $0x20] sm:$0xff]
    %v492 = vld [vmem:[#allocation4 + $0x28] sm:$0xff]
    %v493 = vld [vmem:[#allocation4 + $0x30] sm:$0xff]
    %v494 = vld [vmem:[#allocation4 + $0x38] sm:$0xff]
    %v495 = vld [vmem:[#allocation4 + $0x40] sm:$0xff]
    %v496 = vld [vmem:[#allocation4 + $0x48] sm:$0xff]
    %v497 = vld [vmem:[#allocation4 + $0x50] sm:$0xff]
    %v498 = vld [vmem:[#allocation4 + $0x58] sm:$0xff]
    %v499 = vld [vmem:[#allocation4 + $0x60] sm:$0xff]
    %v500 = vld [vmem:[#allocation4 + $0x68] sm:$0xff]
    %v501 = vld [vmem:[#allocation4 + $0x70] sm:$0xff]
    %v502 = vld [vmem:[#allocation4 + $0x78] sm:$0xff]
    %503 = vmatpush.msra.mxu0 0.0
    %504 = vmatpush.msra.mxu0 0.0
    %505 = vmatpush.msra.mxu0 0.0
    %506 = vmatpush.msra.mxu0 0.0
    %507 = vmatpush.msra.mxu0 0.0
    %508 = vmatpush.msra.mxu0 0.0
    %509 = vmatpush.msra.mxu0 0.0
    %510 = vmatpush.msra.mxu0 0.0
    %511 = vmatpush.msra.mxu0 0.0
    %512 = vmatpush.msra.mxu0 0.0
    %513 = vmatpush.msra.mxu0 0.0
    %514 = vmatpush.msra.mxu0 0.0
    %515 = vmatpush.msra.mxu0 0.0
    %516 = vmatpush.msra.mxu0 0.0
    %517 = vmatpush.msra.mxu0 %v99
    %518 = vmatpush.msra.mxu0 %v98
    %519 = vmatmul.f32.gmra.mxu0 %v150
    %v520 = vpop.f32.mrf.mxu0
    %v521 = vadd.f32 0.0, %v520
    %522 = vmatmul.f32.gmra.mxu0 %v153
    %v523 = vpop.f32.mrf.mxu0
    %v524 = vadd.f32 0.0, %v523
    %525 = vmatmul.f32.gmra.mxu0 %v156
    %v526 = vpop.f32.mrf.mxu0
    %v527 = vadd.f32 0.0, %v526
    %528 = vmatmul.f32.gmra.mxu0 %v159
    %v529 = vpop.f32.mrf.mxu0
    %v530 = vadd.f32 0.0, %v529
    %531 = vmatmul.f32.gmra.mxu0 %v162
    %v532 = vpop.f32.mrf.mxu0
    %v533 = vadd.f32 0.0, %v532
    %534 = vmatmul.f32.gmra.mxu0 %v165
    %v535 = vpop.f32.mrf.mxu0
    %v536 = vadd.f32 0.0, %v535
    %537 = vmatmul.f32.gmra.mxu0 %v168
    %v538 = vpop.f32.mrf.mxu0
    %v539 = vadd.f32 0.0, %v538
    %540 = vmatmul.f32.gmra.mxu0 %v171
    %v541 = vpop.f32.mrf.mxu0
    %v542 = vadd.f32 0.0, %v541
    %543 = vmatmul.f32.gmra.mxu0 %v174
    %v544 = vpop.f32.mrf.mxu0
    %v545 = vadd.f32 0.0, %v544
    %546 = vmatmul.f32.gmra.mxu0 %v177
    %v547 = vpop.f32.mrf.mxu0
    %v548 = vadd.f32 0.0, %v547
    %549 = vmatmul.f32.gmra.mxu0 %v180
    %v550 = vpop.f32.mrf.mxu0
    %v551 = vadd.f32 0.0, %v550
    %552 = vmatmul.f32.gmra.mxu0 %v183
    %v553 = vpop.f32.mrf.mxu0
    %v554 = vadd.f32 0.0, %v553
    %555 = vmatmul.f32.gmra.mxu0 %v186
    %v556 = vpop.f32.mrf.mxu0
    %v557 = vadd.f32 0.0, %v556
    %558 = vmatmul.f32.gmra.mxu0 %v189
    %v559 = vpop.f32.mrf.mxu0
    %v560 = vadd.f32 0.0, %v559
    %561 = vmatmul.f32.gmra.mxu0 %v192
    %v562 = vpop.f32.mrf.mxu0
    %v563 = vadd.f32 0.0, %v562
    %564 = vmatmul.f32.gmra.mxu0 %v195
    %v565 = vpop.f32.mrf.mxu0
    %v566 = vadd.f32 0.0, %v565
    %567 = vdwg.mxu0
    %v568 = vadd.f32 %v487, %v521
    %v569 = vadd.f32 %v488, %v524
    %v570 = vadd.f32 %v489, %v527
    %v571 = vadd.f32 %v490, %v530
    %v572 = vadd.f32 %v491, %v533
    %v573 = vadd.f32 %v492, %v536
    %v574 = vadd.f32 %v493, %v539
    %v575 = vadd.f32 %v494, %v542
    %v576 = vadd.f32 %v495, %v545
    %v577 = vadd.f32 %v496, %v548
    %v578 = vadd.f32 %v497, %v551
    %v579 = vadd.f32 %v498, %v554
    %v580 = vadd.f32 %v499, %v557
    %v581 = vadd.f32 %v500, %v560
    %v582 = vadd.f32 %v501, %v563
    %v583 = vadd.f32 %v502, %v566
    %584 = vst [vmem:[#allocation4] sm:$0xff] %v568
    %585 = vst [vmem:[#allocation4 + $0x8] sm:$0xff] %v569
    %586 = vst [vmem:[#allocation4 + $0x10] sm:$0xff] %v570
    %587 = vst [vmem:[#allocation4 + $0x18] sm:$0xff] %v571
    %588 = vst [vmem:[#allocation4 + $0x20] sm:$0xff] %v572
    %589 = vst [vmem:[#allocation4 + $0x28] sm:$0xff] %v573
    %590 = vst [vmem:[#allocation4 + $0x30] sm:$0xff] %v574
    %591 = vst [vmem:[#allocation4 + $0x38] sm:$0xff] %v575
    %592 = vst [vmem:[#allocation4 + $0x40] sm:$0xff] %v576
    %593 = vst [vmem:[#allocation4 + $0x48] sm:$0xff] %v577
    %594 = vst [vmem:[#allocation4 + $0x50] sm:$0xff] %v578
    %595 = vst [vmem:[#allocation4 + $0x58] sm:$0xff] %v579
    %596 = vst [vmem:[#allocation4 + $0x60] sm:$0xff] %v580
    %597 = vst [vmem:[#allocation4 + $0x68] sm:$0xff] %v581
    %598 = vst [vmem:[#allocation4 + $0x70] sm:$0xff] %v582
    %599 = vst [vmem:[#allocation4 + $0x78] sm:$0xff] %v583
    // Predicated region
    $region22: #{tpu_custom_call.1} parent=1 // pred_check
      %p600 = pneg %p44
    $region23: #{tpu_custom_call.1} parent=1 // pred_check_branch
      %602 = sbr.rel (%p600) target = $region25
    $region24: #{tpu_custom_call.1} parent=1 // pred_region
      %v603 = vld [vmem:[#allocation2] sm:$0xff]
      %v604 = vld [vmem:[#allocation2 + $0x8] sm:$0xff]
      %v605 = vld [vmem:[#allocation2 + $0x10] sm:$0xff]
      %v606 = vld [vmem:[#allocation2 + $0x18] sm:$0xff]
      %v607 = vld [vmem:[#allocation2 + $0x20] sm:$0xff]
      %v608 = vld [vmem:[#allocation2 + $0x28] sm:$0xff]
      %v609 = vld [vmem:[#allocation2 + $0x30] sm:$0xff]
      %v610 = vld [vmem:[#allocation2 + $0x38] sm:$0xff]
      %v611 = vld [vmem:[#allocation2 + $0x40] sm:$0xff]
      %v612 = vld [vmem:[#allocation2 + $0x48] sm:$0xff]
      %v613 = vld [vmem:[#allocation2 + $0x50] sm:$0xff]
      %v614 = vld [vmem:[#allocation2 + $0x58] sm:$0xff]
      %v615 = vld [vmem:[#allocation2 + $0x60] sm:$0xff]
      %v616 = vld [vmem:[#allocation2 + $0x68] sm:$0xff]
      %v617 = vld [vmem:[#allocation2 + $0x70] sm:$0xff]
      %v618 = vld [vmem:[#allocation2 + $0x78] sm:$0xff]
      %v619 = vmul.f32 %v603, %v603
      %v620 = vmul.f32 %v604, %v604
      %v621 = vmul.f32 %v605, %v605
      %v622 = vmul.f32 %v606, %v606
      %v623 = vmul.f32 %v607, %v607
      %v624 = vmul.f32 %v608, %v608
      %v625 = vmul.f32 %v609, %v609
      %v626 = vmul.f32 %v610, %v610
      %v627 = vmul.f32 %v611, %v611
      %v628 = vmul.f32 %v612, %v612
      %v629 = vmul.f32 %v613, %v613
      %v630 = vmul.f32 %v614, %v614
      %v631 = vmul.f32 %v615, %v615
      %v632 = vmul.f32 %v616, %v616
      %v633 = vmul.f32 %v617, %v617
      %v634 = vmul.f32 %v618, %v618
      %v635 = vadd.f32 %v619, %v620
      %v636 = vadd.f32 %v635, %v621
      %v637 = vadd.f32 %v636, %v622
      %v638 = vadd.f32 %v637, %v623
      %v639 = vadd.f32 %v638, %v624
      %v640 = vadd.f32 %v639, %v625
      %v641 = vadd.f32 %v640, %v626
      %v642 = vadd.f32 %v641, %v627
      %v643 = vadd.f32 %v642, %v628
      %v644 = vadd.f32 %v643, %v629
      %v645 = vadd.f32 %v644, %v630
      %v646 = vadd.f32 %v645, %v631
      %v647 = vadd.f32 %v646, %v632
      %v648 = vadd.f32 %v647, %v633
      %v649 = vadd.f32 %v648, %v634
      %650 = vadd.xlane.f32.xlu0 %v649
      %v651 = vpop.xlane.xlu0 %650
      %v652 = vrot.slane %v651, 4
      %v653 = vadd.f32 %v651, %v652
      %v654 = vrot.slane %v653, 2
      %v655 = vadd.f32 %v653, %v654
      %v656 = vrot.slane %v655, 1
      %v657 = vadd.f32 %v655, %v656
      %s658 = vtos %v657
      %v659 = vld [vmem:[#allocation3] sm:$0xff]
      %v660 = vld [vmem:[#allocation3 + $0x8] sm:$0xff]
      %v661 = vld [vmem:[#allocation3 + $0x10] sm:$0xff]
      %v662 = vld [vmem:[#allocation3 + $0x18] sm:$0xff]
      %v663 = vld [vmem:[#allocation3 + $0x20] sm:$0xff]
      %v664 = vld [vmem:[#allocation3 + $0x28] sm:$0xff]
      %v665 = vld [vmem:[#allocation3 + $0x30] sm:$0xff]
      %v666 = vld [vmem:[#allocation3 + $0x38] sm:$0xff]
      %v667 = vld [vmem:[#allocation3 + $0x40] sm:$0xff]
      %v668 = vld [vmem:[#allocation3 + $0x48] sm:$0xff]
      %v669 = vld [vmem:[#allocation3 + $0x50] sm:$0xff]
      %v670 = vld [vmem:[#allocation3 + $0x58] sm:$0xff]
      %v671 = vld [vmem:[#allocation3 + $0x60] sm:$0xff]
      %v672 = vld [vmem:[#allocation3 + $0x68] sm:$0xff]
      %v673 = vld [vmem:[#allocation3 + $0x70] sm:$0xff]
      %v674 = vld [vmem:[#allocation3 + $0x78] sm:$0xff]
      %v675 = vmul.f32 %v659, %v659
      %v676 = vmul.f32 %v660, %v660
      %v677 = vmul.f32 %v661, %v661
      %v678 = vmul.f32 %v662, %v662
      %v679 = vmul.f32 %v663, %v663
      %v680 = vmul.f32 %v664, %v664
      %v681 = vmul.f32 %v665, %v665
      %v682 = vmul.f32 %v666, %v666
      %v683 = vmul.f32 %v667, %v667
      %v684 = vmul.f32 %v668, %v668
      %v685 = vmul.f32 %v669, %v669
      %v686 = vmul.f32 %v670, %v670
      %v687 = vmul.f32 %v671, %v671
      %v688 = vmul.f32 %v672, %v672
      %v689 = vmul.f32 %v673, %v673
      %v690 = vmul.f32 %v674, %v674
      %v691 = vadd.f32 %v675, %v676
      %v692 = vadd.f32 %v691, %v677
      %v693 = vadd.f32 %v692, %v678
      %v694 = vadd.f32 %v693, %v679
      %v695 = vadd.f32 %v694, %v680
      %v696 = vadd.f32 %v695, %v681
      %v697 = vadd.f32 %v696, %v682
      %v698 = vadd.f32 %v697, %v683
      %v699 = vadd.f32 %v698, %v684
      %v700 = vadd.f32 %v699, %v685
      %v701 = vadd.f32 %v700, %v686
      %v702 = vadd.f32 %v701, %v687
      %v703 = vadd.f32 %v702, %v688
      %v704 = vadd.f32 %v703, %v689
      %v705 = vadd.f32 %v704, %v690
      %706 = vadd.xlane.f32.xlu0 %v705
      %v707 = vpop.xlane.xlu0 %706
      %v708 = vrot.slane %v707, 4
      %v709 = vadd.f32 %v707, %v708
      %v710 = vrot.slane %v709, 2
      %v711 = vadd.f32 %v709, %v710
      %v712 = vrot.slane %v711, 1
      %v713 = vadd.f32 %v711, %v712
      %s714 = vtos %v713
      %v715 = vld [vmem:[#allocation4] sm:$0xff]
      %v716 = vld [vmem:[#allocation4 + $0x8] sm:$0xff]
      %v717 = vld [vmem:[#allocation4 + $0x10] sm:$0xff]
      %v718 = vld [vmem:[#allocation4 + $0x18] sm:$0xff]
      %v719 = vld [vmem:[#allocation4 + $0x20] sm:$0xff]
      %v720 = vld [vmem:[#allocation4 + $0x28] sm:$0xff]
      %v721 = vld [vmem:[#allocation4 + $0x30] sm:$0xff]
      %v722 = vld [vmem:[#allocation4 + $0x38] sm:$0xff]
      %v723 = vld [vmem:[#allocation4 + $0x40] sm:$0xff]
      %v724 = vld [vmem:[#allocation4 + $0x48] sm:$0xff]
      %v725 = vld [vmem:[#allocation4 + $0x50] sm:$0xff]
      %v726 = vld [vmem:[#allocation4 + $0x58] sm:$0xff]
      %v727 = vld [vmem:[#allocation4 + $0x60] sm:$0xff]
      %v728 = vld [vmem:[#allocation4 + $0x68] sm:$0xff]
      %v729 = vld [vmem:[#allocation4 + $0x70] sm:$0xff]
      %v730 = vld [vmem:[#allocation4 + $0x78] sm:$0xff]
      %v731 = vmul.f32 %v715, %v715
      %v732 = vmul.f32 %v716, %v716
      %v733 = vmul.f32 %v717, %v717
      %v734 = vmul.f32 %v718, %v718
      %v735 = vmul.f32 %v719, %v719
      %v736 = vmul.f32 %v720, %v720
      %v737 = vmul.f32 %v721, %v721
      %v738 = vmul.f32 %v722, %v722
      %v739 = vmul.f32 %v723, %v723
      %v740 = vmul.f32 %v724, %v724
      %v741 = vmul.f32 %v725, %v725
      %v742 = vmul.f32 %v726, %v726
      %v743 = vmul.f32 %v727, %v727
      %v744 = vmul.f32 %v728, %v728
      %v745 = vmul.f32 %v729, %v729
      %v746 = vmul.f32 %v730, %v730
      %v747 = vadd.f32 %v731, %v732
      %v748 = vadd.f32 %v747, %v733
      %v749 = vadd.f32 %v748, %v734
      %v750 = vadd.f32 %v749, %v735
      %v751 = vadd.f32 %v750, %v736
      %v752 = vadd.f32 %v751, %v737
      %v753 = vadd.f32 %v752, %v738
      %v754 = vadd.f32 %v753, %v739
      %v755 = vadd.f32 %v754, %v740
      %v756 = vadd.f32 %v755, %v741
      %v757 = vadd.f32 %v756, %v742
      %v758 = vadd.f32 %v757, %v743
      %v759 = vadd.f32 %v758, %v744
      %v760 = vadd.f32 %v759, %v745
      %v761 = vadd.f32 %v760, %v746
      %762 = vadd.xlane.f32.xlu0 %v761
      %v763 = vpop.xlane.xlu0 %762
      %v764 = vrot.slane %v763, 4
      %v765 = vadd.f32 %v763, %v764
      %v766 = vrot.slane %v765, 2
      %v767 = vadd.f32 %v765, %v766
      %v768 = vrot.slane %v767, 1
      %v769 = vadd.f32 %v767, %v768
      %s770 = vtos %v769
      %v771 = vstv %s658
      %v772 = vrsqrt.pop %v771
      %v773 = vmul.f32 %v772, %v771
      %v774 = vmul.f32 %v773, %v772
      %v775 = vmul.f32 0.5, %v774
      %v776 = vsub.f32 1.5, %v775
      %v777 = vmul.f32 %v772, %v776
      %v778 = vmul.f32 %v771, %v777
      %vm779 = vcmp.eq.f32.partialorder %v771, inf
      %v780 = vsel %vm779, %v771, %v778
      %vm781 = vcmp.eq.f32.partialorder %v771, 0.0
      %v782 = vand.u32 %v771, 2147483648
      %v783 = vsel %vm781, %v782, %v780
      %s784 = vtos %v783
      %v785 = vstv %s714
      %v786 = vrsqrt.pop %v785
      %v787 = vmul.f32 %v786, %v785
      %v788 = vmul.f32 %v787, %v786
      %v789 = vmul.f32 0.5, %v788
      %v790 = vsub.f32 1.5, %v789
      %v791 = vmul.f32 %v786, %v790
      %v792 = vmul.f32 %v785, %v791
      %vm793 = vcmp.eq.f32.partialorder %v785, inf
      %v794 = vsel %vm793, %v785, %v792
      %vm795 = vcmp.eq.f32.partialorder %v785, 0.0
      %v796 = vand.u32 %v785, 2147483648
      %v797 = vsel %vm795, %v796, %v794
      %s798 = vtos %v797
      %s799 = smul.f32 %s784, %s798
      %v800 = vstv %s799
      %v801 = vrcp.pop %v800
      %v802 = vmul.f32 %v800, %v801
      %v803 = vsub.f32 1.0, %v802
      %v804 = vmul.f32 %v801, %v803
      %v805 = vadd.f32 %v801, %v804
      %vm806 = vweird.f32 %v800
      %vm807 = vweird.f32 %v801
      %vm808 = vmor %vm806, %vm807
      %v809 = vsel %vm808, %v801, %v805
      %v810 = vand.u32 2147483647, %v800
      %vm811 = vcmp.eq.f32.partialorder %v810, 8.507059e+37
      %v812 = vand.u32 %v800, 2147483648
      %v813 = vor.u32 1.1754944e-38, %v812
      %v814 = vsel %vm811, %v813, %v809
      %s815 = vtos %v814
      %s816 = smul.f32 %s770, %s815
      %s817 = scalar_lea.smem [#allocation10], 0
      %818 = sst [smem:[%s817]] %s816
    $region25: #{tpu_custom_call.1} parent=1 // pred_fallthru
      _
    // Predicated region
    $region26: #{tpu_custom_call.1} parent=1 // pred_check
      _
    $region27: #{tpu_custom_call.1} parent=1 // pred_check_branch
      %820 = sbr.rel (0) target = $region29
    $region28: #{tpu_custom_call.1} parent=1 // pred_region
      %822 = vsyncadd [#allocation7], 0
      %s824 = sshll.u32 %s2, 4
      %s825 = int_to_ptr.hbm [resolvable:$true] %s824
      %827 = dma.smem_to_hbm [#allocation10], 16, %s825, [#allocation7]
    $region29: #{tpu_custom_call.1} parent=1 // pred_fallthru
      _
    // Predicated region
    $region30: #{tpu_custom_call.1} parent=1 // pred_check
      _
    $region31: #{tpu_custom_call.1} parent=1 // pred_check_branch
      %829 = sbr.rel (0) target = $region33
    $region32: #{tpu_custom_call.1} parent=1 // pred_region
      %831 = dma.done [#allocation7], 16
    $region33: #{tpu_custom_call.1} parent=1 // pred_fallthru
      _
    %832 = sfence
    %833 = vsyncpa [#allocation6], 1
    %834 = vsyncpa [#allocation9], 1
    %835 = vsyncpa [#allocation7], 1

</llo_original>
